<compile_context>
chip_gen: v7x
topology: tpu7x:2x2x1
jax: 0.10.0
libtpu: 0.0.40
codegen_flags: <defaults>
</compile_context>

<pallas_src>
import jax
import jax.numpy as jnp
from jax.experimental import pallas as pl
from jax.experimental.pallas import tpu as pltpu


def _matmul_bias_kernel(x_ref, w_ref, b_ref, o_ref):
    # x_ref: (TM, 4*Cin)   im2col rows for this grid step
    # w_ref: (4*Cin, Kp)   recombined sub-pixel weights (constant index map)
    # b_ref: (1, Kp)       bias tiled over the 4 sub-pixel chunks
    # o_ref: (TM, Kp)      packed output rows, Kp % 128 == 0 -> unmasked stores
    acc = jnp.dot(x_ref[...], w_ref[...], preferred_element_type=jnp.float32)
    o_ref[...] = (acc + b_ref[...]).astype(o_ref.dtype)


def upconv_pallas(x_nchw, w_oihw, bias, *, compute_dtype=jnp.float32, block_m=512):
    """Forward pass of Upconv: nearest 2x upsample, 'same' pad (k=2), 2x2 conv."""
    N, Cin, H, W = x_nchw.shape
    Cout = w_oihw.shape[0]
    K = 4 * Cin
    # Packed output width: 4 sub-pixel chunks of Cout real channels, contiguous,
    # padded at the end to a multiple of 128 (lane-dense stores).
    Kp = ((4 * Cout + 127) // 128) * 128

    # ---- Recombined sub-pixel weights: one matmul covers all taps / sub-pixels.
    def tap(ky, kx):
        return jnp.transpose(w_oihw[:, :, ky, kx], (1, 0))        # (Cin, Cout)

    w00, w01, w10, w11 = tap(0, 0), tap(0, 1), tap(1, 0), tap(1, 1)
    z = jnp.zeros_like(w00)
    # Row blocks follow im2col order [x(a,b), x(a,b+1), x(a+1,b), x(a+1,b+1)];
    # column chunks are sub-pixel positions 2p+q.
    wc00 = jnp.concatenate([w00 + w01 + w10 + w11, z, z, z], axis=0)   # (p,q)=(0,0)
    wc01 = jnp.concatenate([w00 + w10, w01 + w11, z, z], axis=0)       # (0,1)
    wc10 = jnp.concatenate([w00 + w01, z, w10 + w11, z], axis=0)       # (1,0)
    wc11 = jnp.concatenate([w00, w01, w10, w11], axis=0)               # (1,1)
    w_big = jnp.concatenate([wc00, wc01, wc10, wc11], axis=1)          # (4Cin, 4Cout)
    w_big = jnp.pad(w_big, ((0, 0), (0, Kp - 4 * Cout))).astype(compute_dtype)

    b_big = jnp.tile(bias.astype(jnp.float32), 4)
    b_big = jnp.pad(b_big, (0, Kp - 4 * Cout)).reshape(1, Kp)

    # ---- Wrapper-side im2col of the ORIGINAL (never-upsampled) image.
    # Zero pad right/bottom by 1 so out-of-range taps read 0, which reproduces
    # the TF-"same" pad of the upsampled image exactly.
    x_nhwc = jnp.transpose(x_nchw, (0, 2, 3, 1))                       # (N,H,W,Cin)
    xp = jnp.pad(x_nhwc, ((0, 0), (0, 1), (0, 1), (0, 0)))
    patch = jnp.concatenate(
        [xp[:, :H, :W], xp[:, :H, 1:], xp[:, 1:, :W], xp[:, 1:, 1:]], axis=-1)
    patch = patch.reshape(N * H * W, K).astype(compute_dtype)          # (M, 4Cin)

    # ---- M tiling: rows-per-step big enough to amortize the ~0.35us grid-step
    # overhead, sublane-aligned, and >= 2 parallel steps so both v7x TCs work.
    M = N * H * W
    tm = min(block_m, M)
    if M > 8 and tm > M // 2:          # guarantee at least 2 grid steps
        tm = M // 2
    tm = max(8, (tm // 8) * 8)
    grid_m = pl.cdiv(M, tm)
    m_pad = grid_m * tm
    if m_pad != M:
        patch = jnp.pad(patch, ((0, m_pad - M), (0, 0)))   # zero rows -> sliced off

    out_packed = pl.pallas_call(
        _matmul_bias_kernel,
        out_shape=jax.ShapeDtypeStruct((m_pad, Kp), x_nchw.dtype),
        grid_spec=pltpu.PrefetchScalarGridSpec(
            num_scalar_prefetch=0,
            grid=(grid_m,),
            in_specs=[
                pl.BlockSpec((tm, K), lambda i: (i, 0)),
                pl.BlockSpec((K, Kp), lambda i: (0, 0)),   # VMEM-resident weights
                pl.BlockSpec((1, Kp), lambda i: (0, 0)),   # VMEM-resident bias
            ],
            out_specs=pl.BlockSpec((tm, Kp), lambda i: (i, 0)),
        ),
        compiler_params=pltpu.CompilerParams(
            dimension_semantics=("parallel",),
            vmem_limit_bytes=32 * 1024 * 1024),
    )(patch, w_big, b_big)

    # ---- Unpack: rows are (n, a, b); columns are (2p+q)*Cout + c.
    out6 = out_packed[:M, :4 * Cout].reshape(N, H, W, 2, 2, Cout)
    # (n, a, b, p, q, c) -> (n, c, a, p, b, q) -> (N, Cout, 2H, 2W); one fused
    # XLA transpose (see TODO above for dropping it when 2W >= 128).
    out = jnp.transpose(out6, (0, 5, 1, 3, 2, 4)).reshape(N, Cout, 2 * H, 2 * W)
    return out


def _reference_upconv(x_nchw, w_oihw, bias):
    # Nearest 2x upsample, pad right/bottom by 1 with zeros, 2x2 valid conv.
    up = jnp.repeat(jnp.repeat(x_nchw, 2, axis=2), 2, axis=3)
    up = jnp.pad(up, ((0, 0), (0, 0), (0, 1), (0, 1)))
    out = jax.lax.conv_general_dilated(
        up, w_oihw, window_strides=(1, 1), padding="VALID",
        dimension_numbers=("NCHW", "OIHW", "NCHW"))
    return out + bias.reshape(1, -1, 1, 1)


if __name__ == "__main__":
    # Small shapes consistent with Upconv(in_channels=4, out_channels=8)
    N, Cin, Cout, H, W = 2, 4, 8, 16, 16

    key = jax.random.PRNGKey(0)
    kx, kw, kb = jax.random.split(key, 3)

    x = jax.random.normal(kx, (N, Cin, H, W), dtype=jnp.float32)

    # PyTorch Conv2d default init: U(-1/sqrt(fan_in), +), fan_in = Cin*2*2
    fan_in = Cin * 2 * 2
    bound = 1.0 / (fan_in ** 0.5)
    w = jax.random.uniform(kw, (Cout, Cin, 2, 2), jnp.float32, -bound, bound)
    b = jax.random.uniform(kb, (Cout,), jnp.float32, -bound, bound)

    upconv_fn = jax.jit(upconv_pallas)
    out = jax.block_until_ready(upconv_fn(x, w, b))

    ref = _reference_upconv(x, w, b)
    assert out.shape == (N, Cout, 2 * H, 2 * W)
    assert jnp.allclose(out, ref, atol=1e-4, rtol=1e-4)

    print("KERNEL_OK")
</pallas_src>

<mosaic_0001>
module attributes {stable_mosaic.version = 11 : i64} {
  func.func @_matmul_bias_kernel(%arg0: i32, %arg1: memref<256x16xf32, #tpu.memory_space<vmem>>, %arg2: memref<16x128xf32, #tpu.memory_space<vmem>>, %arg3: memref<1x128xf32, #tpu.memory_space<vmem>>, %arg4: memref<256x128xf32, #tpu.memory_space<vmem>>) attributes {dimension_semantics = [#tpu.dimension_semantics<parallel>], iteration_bounds = array<i64: 2>, scalar_prefetch = 0 : i64, scratch_operands = 0 : i64, tpu.core_type = #tpu.core_type<tc>, window_params = [{transform_indices = @transform_0, window_bounds = array<i64: 256, 16>}, {pipeline_mode = #tpu.pipeline_mode<synchronous>, transform_indices = @transform_1, window_bounds = array<i64: 16, 128>}, {pipeline_mode = #tpu.pipeline_mode<synchronous>, transform_indices = @transform_2, window_bounds = array<i64: 1, 128>}, {transform_indices = @transform_3, window_bounds = array<i64: 256, 128>}]} {
    %c0 = arith.constant 0 : index
    %c0_0 = arith.constant 0 : index
    %0 = vector.load %arg1[%c0, %c0_0] : memref<256x16xf32, #tpu.memory_space<vmem>>, vector<256x16xf32>
    %c0_1 = arith.constant 0 : index
    %c0_2 = arith.constant 0 : index
    %1 = vector.load %arg2[%c0_1, %c0_2] : memref<16x128xf32, #tpu.memory_space<vmem>>, vector<16x128xf32>
    %cst = arith.constant dense<0.000000e+00> : vector<256x128xf32>
    %2 = tpu.matmul %0, %1, %cst {dimension_numbers = #tpu.dot_dimension_numbers<[1], [0], [0], [1], [0, 0, 1, 1], [], []>} : vector<256x16xf32>, vector<16x128xf32>, vector<256x128xf32> -> vector<256x128xf32>
    %c0_3 = arith.constant 0 : index
    %c0_4 = arith.constant 0 : index
    %3 = vector.load %arg3[%c0_3, %c0_4] : memref<1x128xf32, #tpu.memory_space<vmem>>, vector<1x128xf32>
    %4 = vector.broadcast %3 : vector<1x128xf32> to vector<256x128xf32>
    %5 = arith.addf %2, %4 : vector<256x128xf32>
    %c0_5 = arith.constant 0 : index
    %c0_6 = arith.constant 0 : index
    %6 = vector.load %arg4[%c0_5, %c0_6] : memref<256x128xf32, #tpu.memory_space<vmem>>, vector<256x128xf32>
    tpu.vector_store %arg4[%c0_5, %c0_6], %5 {strides = array<i32>} : memref<256x128xf32, #tpu.memory_space<vmem>>, vector<256x128xf32>,
    return
  }
  func.func @transform_0(%arg0: i32) -> (i32, i32) {
    %c0_i32 = arith.constant 0 : i32
    %c0_i32_0 = arith.constant 0 : i32
    return %arg0, %c0_i32 : i32, i32
  }
  func.func @transform_1(%arg0: i32) -> (i32, i32) {
    %c0_i32 = arith.constant 0 : i32
    %c0_i32_0 = arith.constant 0 : i32
    %c0_i32_1 = arith.constant 0 : i32
    return %c0_i32, %c0_i32_0 : i32, i32
  }
  func.func @transform_2(%arg0: i32) -> (i32, i32) {
    %c0_i32 = arith.constant 0 : i32
    %c0_i32_0 = arith.constant 0 : i32
    %c0_i32_1 = arith.constant 0 : i32
    return %c0_i32, %c0_i32_0 : i32, i32
  }
  func.func @transform_3(%arg0: i32) -> (i32, i32) {
    %c0_i32 = arith.constant 0 : i32
    %c0_i32_0 = arith.constant 0 : i32
    return %arg0, %c0_i32 : i32, i32
  }
}

</mosaic_0001>

<llo_original>
// kernel: tile.8
$region0: #{tile.8}
  #allocation0 [shape = 's32[1]{0}', space=sflag, size = 0x4, scoped, tag = 'scoped memory for tile.8']
  %s0 = inlined_call_operand.vmem [shape: f32[8], index: 0, kind: input, shape index: {}]
  %s1 = inlined_call_operand.vmem [shape: f32[4,8], index: 1, kind: output, shape index: {}]
  // Predicated region
  $region2: #{tile.8} parent=0 // pred_check
    _
  $region3: #{tile.8} parent=0 // pred_check_branch
    %3 = sbr.rel (0) target = $region5
  $region4: #{tile.8} parent=0 // pred_region
    _
  $region5: #{tile.8} parent=0 // pred_fallthru
    _
  %v4 = vld [vmem:[%s0] ss:$0 sm:$0xff]
  %5 = vst [vmem:[%s1] sm:$0xf] %v4

// kernel: tile.9
$region0: #{tile.9}
  %s0 = inlined_call_operand.vmem [shape: f32[4,8], index: 0, kind: input, shape index: {}]
  %s1 = inlined_call_operand.vmem [shape: f32[32], index: 1, kind: output, shape index: {}]
  $region1: #{tile.9} parent=0
    #allocation0 [shape = 'u8[4096]{0}', space=vmem, size = 0x1000, scoped, tag = 'scoped mem for output reshape']
    #allocation1 [shape = 'u8[4096]{0}', space=vmem, size = 0x1000, scoped, tag = 'scoped mem for input reshape']
    %s3 = sshllo.u32 0, 4
    %v4 = vld [vmem:[%s0] sm:%s3]
    %5 = vst [vmem:[#allocation1] sm:%s3] %v4
    %v6 = vld [vmem:[#allocation1] sm:$0x1]
    %vm7 = vcmask 64512
    %8 = vst.msk [vmem:[#allocation0] sm:$0x1] %vm7, %v6
    %s9 = scalar_lea.vmem [#allocation1], 3
    %v10 = vld [vmem:[%s9] sm:$0x1]
    %11 = vrot.lane.b32.xlu0 %v10, 24
    %v12 = vpop.permute.xlu0 %11
    %vm13 = vcmask 261312
    %14 = vst.msk [vmem:[#allocation0] sm:$0x1] %vm13, %v12
    %s15 = scalar_lea.vmem [#allocation1], 2
    %v16 = vld [vmem:[%s15] sm:$0x1]
    %17 = vrot.lane.b32.xlu0 %v16, 16
    %v18 = vpop.permute.xlu0 %17
    %vm19 = vcmask 195712
    %20 = vst.msk [vmem:[#allocation0] sm:$0x1] %vm19, %v18
    %s21 = scalar_lea.vmem [#allocation1], 1
    %v22 = vld [vmem:[%s21] sm:$0x1]
    %23 = vrot.lane.b32.xlu0 %v22, 8
    %v24 = vpop.permute.xlu0 %23
    %vm25 = vcmask 130112
    %26 = vst.msk [vmem:[#allocation0] sm:$0x1] %vm25, %v24
    %s28 = sshllo.u32 0, 1
    %v30 = vld [vmem:[#allocation0] sm:%s28]
    %s31 = sshllo.u32 0, 1
    %32 = vst [vmem:[%s1] sm:%s31] %v30

// kernel: upconv_pallas.1
$region0: #{upconv_pallas.1}
  #allocation0 [shape = 'u32[]', space=smem, size = 0x4, offset = 0x4, fixed_abs, tag = 'smem constant byte address 0x4 - core index']
  #allocation1 [shape = 'u32[144,128]{1,0:T(1,128)}', space=vmem, size = 0x12000, scoped, tag = 'internal scratch']
  %s0 = inlined_call_operand.vmem [shape: f32[512,16], index: 0, kind: input, shape index: {}]
  %s1 = inlined_call_operand.vmem [shape: f32[16,128], index: 1, kind: input, shape index: {}]
  %s2 = inlined_call_operand.vmem [shape: f32[1,128], index: 2, kind: input, shape index: {}]
  %s3 = inlined_call_operand.vmem [shape: f32[512,128], index: 3, kind: output, shape index: {}]
  %s4 = sld [smem:[#allocation0]]
  $region45: #{upconv_pallas.1} parent=0
    _
  %s6 = ssub.s32 1, %s4
  %s7 = scalar_select 0, %s6, %s4
  loop: start=0, step=1, limit=4
  $region2: #{upconv_pallas.1} parent=0 // loop_pre_header
    _
  $region3: #{upconv_pallas.1} parent=0 // loop_header
    %s9 = sphi 0, %s13
    %p10 = scmp.ge.s32.totalorder %s9, 4
    %s19 = sphi 0, %s21
    %s22 = sphi 0, %s19
    %s23 = sphi 0, %s22
    %s39 = sphi 0, %s23
    %s43 = sphi 0, %s43
    %s45 = sphi 0, %s43
    %s46 = sphi 0, %s45
    %s60 = sphi 0, %s46
    %s64 = sphi 0, %s64
    %s66 = sphi 0, %s64
    %s67 = sphi 0, %s66
    %s81 = sphi 0, %s67
    %s87 = sphi 0, %s89
    %s90 = sphi 0, %s87
    %s91 = sphi 0, %s90
    %s107 = sphi 0, %s91
  $region4: #{upconv_pallas.1} parent=0 // loop_header_branch
    %12 = sbr.rel (%p10) target = $region8
  $region5: #{upconv_pallas.1} parent=0 // loop_body
    %s14 = ssub.s32 %s9, 1
    %s15 = ssub.s32 %s9, 2
    %s16 = sadd.s32 %s9, 1
    %s17 = ssub.s32 %s9, %s16
    %p18 = scmp.eq.s32.totalorder %s17, 0
    %s20 = sadd.s32 %s19, 1
    %s21 = scalar_select %p18, %s19, %s20
    %p24 = pneg %p18
    %p25 = scmp.eq.s32.totalorder %s9, 1
    %p26 = por %p24, %p25
    %p27 = scmp.ne.s32.totalorder %s19, %s22
    %p28 = scmp.eq.s32.totalorder %s9, 0
    %p29 = por %p27, %p28
    %p30 = scmp.ne.s32.totalorder %s19, %s22
    %p31 = scmp.eq.s32.totalorder %s14, 1
    %p32 = por %p30, %p31
    %p33 = scmp.ne.s32.totalorder %s22, %s23
    %p34 = scmp.eq.s32.totalorder %s14, 0
    %p35 = por %p33, %p34
    %p36 = scmp.ne.s32.totalorder %s22, %s23
    %p37 = scmp.eq.s32.totalorder %s15, 1
    %p38 = por %p36, %p37
    %p40 = scmp.ne.s32.totalorder %s23, %s39
    %p41 = scmp.eq.s32.totalorder %s15, 0
    %p42 = por %p40, %p41
    %s44 = sadd.s32 %s43, 1
    %p47 = scmp.eq.s32.totalorder %s9, 1
    %p48 = scmp.ne.s32.totalorder %s43, %s45
    %p49 = scmp.eq.s32.totalorder %s9, 0
    %p50 = por %p48, %p49
    %p51 = scmp.ne.s32.totalorder %s43, %s45
    %p52 = scmp.eq.s32.totalorder %s14, 1
    %p53 = por %p51, %p52
    %p54 = scmp.ne.s32.totalorder %s45, %s46
    %p55 = scmp.eq.s32.totalorder %s14, 0
    %p56 = por %p54, %p55
    %p57 = scmp.ne.s32.totalorder %s45, %s46
    %p58 = scmp.eq.s32.totalorder %s15, 1
    %p59 = por %p57, %p58
    %p61 = scmp.ne.s32.totalorder %s46, %s60
    %p62 = scmp.eq.s32.totalorder %s15, 0
    %p63 = por %p61, %p62
    %s65 = sadd.s32 %s64, 1
    %p68 = scmp.eq.s32.totalorder %s9, 1
    %p69 = scmp.ne.s32.totalorder %s64, %s66
    %p70 = scmp.eq.s32.totalorder %s9, 0
    %p71 = por %p69, %p70
    %p72 = scmp.ne.s32.totalorder %s64, %s66
    %p73 = scmp.eq.s32.totalorder %s14, 1
    %p74 = por %p72, %p73
    %p75 = scmp.ne.s32.totalorder %s66, %s67
    %p76 = scmp.eq.s32.totalorder %s14, 0
    %p77 = por %p75, %p76
    %p78 = scmp.ne.s32.totalorder %s66, %s67
    %p79 = scmp.eq.s32.totalorder %s15, 1
    %p80 = por %p78, %p79
    %p82 = scmp.ne.s32.totalorder %s67, %s81
    %p83 = scmp.eq.s32.totalorder %s15, 0
    %p84 = por %p82, %p83
    %s85 = ssub.s32 %s9, %s16
    %p86 = scmp.eq.s32.totalorder %s85, 0
    %s88 = sadd.s32 %s87, 1
    %s89 = scalar_select %p86, %s87, %s88
    %p92 = pneg %p86
    %p93 = scmp.eq.s32.totalorder %s9, 1
    %p94 = por %p92, %p93
    %p95 = scmp.ne.s32.totalorder %s87, %s90
    %p96 = scmp.eq.s32.totalorder %s9, 0
    %p97 = por %p95, %p96
    %p98 = scmp.ne.s32.totalorder %s87, %s90
    %p99 = scmp.eq.s32.totalorder %s14, 1
    %p100 = por %p98, %p99
    %p101 = scmp.ne.s32.totalorder %s90, %s91
    %p102 = scmp.eq.s32.totalorder %s14, 0
    %p103 = por %p101, %p102
    %p104 = scmp.ne.s32.totalorder %s90, %s91
    %p105 = scmp.eq.s32.totalorder %s15, 1
    %p106 = por %p104, %p105
    %p108 = scmp.ne.s32.totalorder %s91, %s107
    %p109 = scmp.eq.s32.totalorder %s15, 0
    %p110 = por %p108, %p109
    %p111 = scmp.le.s32.totalorder 1, %s9
    %p112 = scmp.lt.s32.totalorder %s9, 3
    %p113 = pnand %p111, %p112
    %p114 = pneg %p113
    // Predicated region
    $region9: #{upconv_pallas.1} parent=5 // pred_check
      _
    $region10: #{upconv_pallas.1} parent=5 // pred_check_branch
      %116 = sbr.rel (%p113) target = $region12
    $region11: #{upconv_pallas.1} parent=5 // pred_region
      %s117 = ssub.s32 %s9, 1
      // Predicated region
      $region13: #{upconv_pallas.1} parent=11 // pred_check
        %p118 = pneg %p56
      $region14: #{upconv_pallas.1} parent=11 // pred_check_branch
        %120 = sbr.rel (%p118) target = $region16
      $region15: #{upconv_pallas.1} parent=11 // pred_region
        _
      $region16: #{upconv_pallas.1} parent=11 // pred_fallthru
        _
      // Predicated region
      $region17: #{upconv_pallas.1} parent=11 // pred_check
        %p121 = pneg %p77
      $region18: #{upconv_pallas.1} parent=11 // pred_check_branch
        %123 = sbr.rel (%p121) target = $region20
      $region19: #{upconv_pallas.1} parent=11 // pred_region
        _
      $region20: #{upconv_pallas.1} parent=11 // pred_fallthru
        _
    $region12: #{upconv_pallas.1} parent=5 // pred_fallthru
      _
    %p124 = scmp.lt.s32.totalorder %s9, 2
    // Predicated region
    $region21: #{upconv_pallas.1} parent=5 // pred_check
      %p125 = pneg %p124
    $region22: #{upconv_pallas.1} parent=5 // pred_check_branch
      %127 = sbr.rel (%p125) target = $region24
    $region23: #{upconv_pallas.1} parent=5 // pred_region
      // Predicated region
      $region25: #{upconv_pallas.1} parent=23 // pred_check
        %p128 = pneg %p29
      $region26: #{upconv_pallas.1} parent=23 // pred_check_branch
        %130 = sbr.rel (%p128) target = $region28
      $region27: #{upconv_pallas.1} parent=23 // pred_region
        %s131 = smul.u32 32, %s9
        %p132 = scmp.lt.s32.totalorder %s131, 63
        %s133 = scalar_select %p132, %s131, 63
        %s134 = smul.addr %s133, 8
        %s135 = scalar_lea.vmem %s0, %s134
        %s136 = smul.u32 32, %s9
      $region28: #{upconv_pallas.1} parent=23 // pred_fallthru
        _
    $region24: #{upconv_pallas.1} parent=5 // pred_fallthru
      _
    %p137 = scmp.le.s32.totalorder 1, %s9
    %p138 = scmp.lt.s32.totalorder %s9, 3
    %p139 = pnand %p137, %p138
    %p140 = pneg %p139
    // Predicated region
    $region29: #{upconv_pallas.1} parent=5 // pred_check
      _
    $region30: #{upconv_pallas.1} parent=5 // pred_check_branch
      %142 = sbr.rel (%p139) target = $region32
    $region31: #{upconv_pallas.1} parent=5 // pred_region
      %s143 = ssub.s32 %s9, 1
      %s144 = smul.u32 32, %s14
      %p145 = scmp.lt.s32.totalorder %s144, 63
      %s146 = scalar_select %p145, %s144, 63
      %s147 = smul.addr %s146, 8
      %s148 = scalar_lea.vmem %s0, %s147
      %p149 = pneg %p35
      %p150 = pneg %p32
      %p151 = pneg %p56
      %p152 = pneg %p53
      %p153 = pneg %p77
      %p154 = pneg %p74
      %p155 = pneg %p103
      %p156 = pneg %p100
      %s157 = smul.u32 32, %s14
      %p158 = scmp.lt.s32.totalorder %s157, 63
      %s159 = scalar_select %p158, %s157, 63
      %s160 = smul.addr %s159, 8
      %s161 = scalar_lea.vmem %s3, %s160
      %s162 = smul.u32 32, %s14
      %p163 = scmp.lt.s32.totalorder %s162, 63
      %s164 = scalar_select %p163, %s162, 63
      %s165 = smul.addr %s164, 8
      %s166 = scalar_lea.vmem %s0, %s165
      %s167 = smul.u32 32, %s14
      %s168 = smul.u32 32, %s14
      %p169 = scmp.lt.s32.totalorder %s168, 63
      %s170 = scalar_select %p169, %s168, 63
      %s171 = smul.addr %s170, 8
      %s172 = scalar_lea.vmem %s3, %s171
      %s173 = smul.u32 32, %s14
      %v174 = vld [vmem:[%s166] sm:$0xff]
      %v175 = vld [vmem:[%s166 + $0x8] sm:$0xff]
      %v176 = vld [vmem:[%s166 + $0x10] sm:$0xff]
      %v177 = vld [vmem:[%s166 + $0x18] sm:$0xff]
      %v178 = vld [vmem:[%s166 + $0x20] sm:$0xff]
      %v179 = vld [vmem:[%s166 + $0x28] sm:$0xff]
      %v180 = vld [vmem:[%s166 + $0x30] sm:$0xff]
      %v181 = vld [vmem:[%s166 + $0x38] sm:$0xff]
      %v182 = vld [vmem:[%s166 + $0x40] sm:$0xff]
      %v183 = vld [vmem:[%s166 + $0x48] sm:$0xff]
      %v184 = vld [vmem:[%s166 + $0x50] sm:$0xff]
      %v185 = vld [vmem:[%s166 + $0x58] sm:$0xff]
      %v186 = vld [vmem:[%s166 + $0x60] sm:$0xff]
      %v187 = vld [vmem:[%s166 + $0x68] sm:$0xff]
      %v188 = vld [vmem:[%s166 + $0x70] sm:$0xff]
      %v189 = vld [vmem:[%s166 + $0x78] sm:$0xff]
      %v190 = vld [vmem:[%s166 + $0x80] sm:$0xff]
      %v191 = vld [vmem:[%s166 + $0x88] sm:$0xff]
      %v192 = vld [vmem:[%s166 + $0x90] sm:$0xff]
      %v193 = vld [vmem:[%s166 + $0x98] sm:$0xff]
      %v194 = vld [vmem:[%s166 + $0xa0] sm:$0xff]
      %v195 = vld [vmem:[%s166 + $0xa8] sm:$0xff]
      %v196 = vld [vmem:[%s166 + $0xb0] sm:$0xff]
      %v197 = vld [vmem:[%s166 + $0xb8] sm:$0xff]
      %v198 = vld [vmem:[%s166 + $0xc0] sm:$0xff]
      %v199 = vld [vmem:[%s166 + $0xc8] sm:$0xff]
      %v200 = vld [vmem:[%s166 + $0xd0] sm:$0xff]
      %v201 = vld [vmem:[%s166 + $0xd8] sm:$0xff]
      %v202 = vld [vmem:[%s166 + $0xe0] sm:$0xff]
      %v203 = vld [vmem:[%s166 + $0xe8] sm:$0xff]
      %v204 = vld [vmem:[%s166 + $0xf0] sm:$0xff]
      %v205 = vld [vmem:[%s166 + $0xf8] sm:$0xff]
      %v206 = vld [vmem:[%s1] sm:$0xff]
      %v207 = vld [vmem:[%s1 + $0x8] sm:$0xff]
      %v208 = vld [vmem:[%s2] sm:$0x1]
      %v210 = vlaneseq
      %v211 = vshrl.u32 %v210, 7
      %v212 = vsub.s32 0, %v211
      %v213 = vrot.slane %v208, %v212
      %vm215 = vcmask 130048
      %v217 = vsel %vm215, %v174, 0
      %v220 = vsel %vm215, %v175, 0
      %v223 = vsel %vm215, %v176, 0
      %v226 = vsel %vm215, %v177, 0
      %v229 = vsel %vm215, %v178, 0
      %v232 = vsel %vm215, %v179, 0
      %v235 = vsel %vm215, %v180, 0
      %v238 = vsel %vm215, %v181, 0
      %v241 = vsel %vm215, %v182, 0
      %v244 = vsel %vm215, %v183, 0
      %v247 = vsel %vm215, %v184, 0
      %v250 = vsel %vm215, %v185, 0
      %v253 = vsel %vm215, %v186, 0
      %v256 = vsel %vm215, %v187, 0
      %v259 = vsel %vm215, %v188, 0
      %v262 = vsel %vm215, %v189, 0
      %v265 = vsel %vm215, %v190, 0
      %v268 = vsel %vm215, %v191, 0
      %v271 = vsel %vm215, %v192, 0
      %v274 = vsel %vm215, %v193, 0
      %v277 = vsel %vm215, %v194, 0
      %v280 = vsel %vm215, %v195, 0
      %v283 = vsel %vm215, %v196, 0
      %v286 = vsel %vm215, %v197, 0
      %v289 = vsel %vm215, %v198, 0
      %v292 = vsel %vm215, %v199, 0
      %v295 = vsel %vm215, %v200, 0
      %v298 = vsel %vm215, %v201, 0
      %v301 = vsel %vm215, %v202, 0
      %v304 = vsel %vm215, %v203, 0
      %v307 = vsel %vm215, %v204, 0
      %v310 = vsel %vm215, %v205, 0
      %312 = vmatprep.subr.mxu0 0.0
      %313 = vmatpush1.msra.mxu0 %v206
      %314 = vmatprep.subr.mxu0 0.0
      %315 = vmatpush1.msra.mxu0 %v207
      %316 = vmatprep.subr.mxu0 0.0
      %317 = vmatpush1.msra.mxu0 0.0
      %318 = vmatprep.subr.mxu0 0.0
      %319 = vmatpush1.msra.mxu0 0.0
      %320 = vmatprep.subr.mxu0 0.0
      %321 = vmatpush1.msra.mxu0 0.0
      %322 = vmatprep.subr.mxu0 0.0
      %323 = vmatpush1.msra.mxu0 0.0
      %324 = vmatprep.subr.mxu0 0.0
      %325 = vmatpush1.msra.mxu0 0.0
      %326 = vmatprep.subr.mxu0 0.0
      %327 = vmatpush1.msra.mxu0 0.0
      %328 = vmatprep.subr.mxu0 0.0
      %329 = vmatpush1.msra.mxu0 0.0
      %330 = vmatprep.subr.mxu0 0.0
      %331 = vmatpush1.msra.mxu0 0.0
      %332 = vmatprep.subr.mxu0 0.0
      %333 = vmatpush1.msra.mxu0 0.0
      %334 = vmatprep.subr.mxu0 0.0
      %335 = vmatpush1.msra.mxu0 0.0
      %336 = vmatprep.subr.mxu0 0.0
      %337 = vmatpush1.msra.mxu0 0.0
      %338 = vmatprep.subr.mxu0 0.0
      %339 = vmatpush1.msra.mxu0 0.0
      %340 = vmatprep.subr.mxu0 0.0
      %341 = vmatpush1.msra.mxu0 0.0
      %342 = vmatprep.subr.mxu0 0.0
      %343 = vmatpush1.msra.mxu0 0.0
      %344 = vmatprep.subr.mxu0 0.0
      %345 = vmatpush1.msra.mxu0 0.0
      %346 = vmatprep.subr.mxu0 0.0
      %347 = vmatpush1.msra.mxu0 0.0
      %348 = vmatprep.subr.mxu0 0.0
      %349 = vmatpush1.msra.mxu0 0.0
      %350 = vmatprep.subr.mxu0 0.0
      %351 = vmatpush1.msra.mxu0 0.0
      %352 = vmatprep.subr.mxu0 0.0
      %353 = vmatpush1.msra.mxu0 0.0
      %354 = vmatprep.subr.mxu0 0.0
      %355 = vmatpush1.msra.mxu0 0.0
      %356 = vmatprep.subr.mxu0 0.0
      %357 = vmatpush1.msra.mxu0 0.0
      %358 = vmatprep.subr.mxu0 0.0
      %359 = vmatpush1.msra.mxu0 0.0
      %360 = vmatprep.subr.mxu0 0.0
      %361 = vmatpush1.msra.mxu0 0.0
      %362 = vmatprep.subr.mxu0 0.0
      %363 = vmatpush1.msra.mxu0 0.0
      %364 = vmatprep.subr.mxu0 0.0
      %365 = vmatpush1.msra.mxu0 0.0
      %366 = vmatprep.subr.mxu0 0.0
      %367 = vmatpush1.msra.mxu0 0.0
      %368 = vmatprep.subr.mxu0 0.0
      %369 = vmatpush1.msra.mxu0 0.0
      %370 = vmatprep.subr.mxu0 0.0
      %371 = vmatpush1.msra.mxu0 0.0
      %372 = vmatprep.subr.mxu0 0.0
      %373 = vmatpush1.msra.mxu0 0.0
      %374 = vmatprep.subr.mxu0 0.0
      %375 = vmatpush1.msra.mxu0 0.0
      %376 = vmatprep.mubr.f32.mxu0 0.0
      %377 = vmatmul.mubr.f32.gmra.mrb[0].mxu0 %v217
      %v378 = vpop.f32.mrb[0].mxu0
      %v379 = vadd.f32 %v213, %v378
      %v380 = vpop.f32.mrb[0].mxu0
      %381 = vmatprep.mubr.f32.mxu0 0.0
      %382 = vmatmul.mubr.f32.gmra.mrb[0].mxu0 %v220
      %v383 = vpop.f32.mrb[0].mxu0
      %v384 = vadd.f32 %v213, %v383
      %v385 = vpop.f32.mrb[0].mxu0
      %386 = vmatprep.mubr.f32.mxu0 0.0
      %387 = vmatmul.mubr.f32.gmra.mrb[0].mxu0 %v223
      %v388 = vpop.f32.mrb[0].mxu0
      %v389 = vadd.f32 %v213, %v388
      %v390 = vpop.f32.mrb[0].mxu0
      %391 = vmatprep.mubr.f32.mxu0 0.0
      %392 = vmatmul.mubr.f32.gmra.mrb[0].mxu0 %v226
      %v393 = vpop.f32.mrb[0].mxu0
      %v394 = vadd.f32 %v213, %v393
      %v395 = vpop.f32.mrb[0].mxu0
      %396 = vmatprep.mubr.f32.mxu0 0.0
      %397 = vmatmul.mubr.f32.gmra.mrb[0].mxu0 %v229
      %v398 = vpop.f32.mrb[0].mxu0
      %v399 = vadd.f32 %v213, %v398
      %v400 = vpop.f32.mrb[0].mxu0
      %401 = vmatprep.mubr.f32.mxu0 0.0
      %402 = vmatmul.mubr.f32.gmra.mrb[0].mxu0 %v232
      %v403 = vpop.f32.mrb[0].mxu0
      %v404 = vadd.f32 %v213, %v403
      %v405 = vpop.f32.mrb[0].mxu0
      %406 = vmatprep.mubr.f32.mxu0 0.0
      %407 = vmatmul.mubr.f32.gmra.mrb[0].mxu0 %v235
      %v408 = vpop.f32.mrb[0].mxu0
      %v409 = vadd.f32 %v213, %v408
      %v410 = vpop.f32.mrb[0].mxu0
      %411 = vmatprep.mubr.f32.mxu0 0.0
      %412 = vmatmul.mubr.f32.gmra.mrb[0].mxu0 %v238
      %v413 = vpop.f32.mrb[0].mxu0
      %v414 = vadd.f32 %v213, %v413
      %v415 = vpop.f32.mrb[0].mxu0
      %416 = vmatprep.mubr.f32.mxu0 0.0
      %417 = vmatmul.mubr.f32.gmra.mrb[0].mxu0 %v241
      %v418 = vpop.f32.mrb[0].mxu0
      %v419 = vadd.f32 %v213, %v418
      %v420 = vpop.f32.mrb[0].mxu0
      %421 = vmatprep.mubr.f32.mxu0 0.0
      %422 = vmatmul.mubr.f32.gmra.mrb[0].mxu0 %v244
      %v423 = vpop.f32.mrb[0].mxu0
      %v424 = vadd.f32 %v213, %v423
      %v425 = vpop.f32.mrb[0].mxu0
      %426 = vmatprep.mubr.f32.mxu0 0.0
      %427 = vmatmul.mubr.f32.gmra.mrb[0].mxu0 %v247
      %v428 = vpop.f32.mrb[0].mxu0
      %v429 = vadd.f32 %v213, %v428
      %v430 = vpop.f32.mrb[0].mxu0
      %431 = vmatprep.mubr.f32.mxu0 0.0
      %432 = vmatmul.mubr.f32.gmra.mrb[0].mxu0 %v250
      %v433 = vpop.f32.mrb[0].mxu0
      %v434 = vadd.f32 %v213, %v433
      %v435 = vpop.f32.mrb[0].mxu0
      %436 = vmatprep.mubr.f32.mxu0 0.0
      %437 = vmatmul.mubr.f32.gmra.mrb[0].mxu0 %v253
      %v438 = vpop.f32.mrb[0].mxu0
      %v439 = vadd.f32 %v213, %v438
      %v440 = vpop.f32.mrb[0].mxu0
      %441 = vmatprep.mubr.f32.mxu0 0.0
      %442 = vmatmul.mubr.f32.gmra.mrb[0].mxu0 %v256
      %v443 = vpop.f32.mrb[0].mxu0
      %v444 = vadd.f32 %v213, %v443
      %v445 = vpop.f32.mrb[0].mxu0
      %446 = vmatprep.mubr.f32.mxu0 0.0
      %447 = vmatmul.mubr.f32.gmra.mrb[0].mxu0 %v259
      %v448 = vpop.f32.mrb[0].mxu0
      %v449 = vadd.f32 %v213, %v448
      %v450 = vpop.f32.mrb[0].mxu0
      %451 = vmatprep.mubr.f32.mxu0 0.0
      %452 = vmatmul.mubr.f32.gmra.mrb[0].mxu0 %v262
      %v453 = vpop.f32.mrb[0].mxu0
      %v454 = vadd.f32 %v213, %v453
      %v455 = vpop.f32.mrb[0].mxu0
      %456 = vmatprep.mubr.f32.mxu0 0.0
      %457 = vmatmul.mubr.f32.gmra.mrb[0].mxu0 %v265
      %v458 = vpop.f32.mrb[0].mxu0
      %v459 = vadd.f32 %v213, %v458
      %v460 = vpop.f32.mrb[0].mxu0
      %461 = vmatprep.mubr.f32.mxu0 0.0
      %462 = vmatmul.mubr.f32.gmra.mrb[0].mxu0 %v268
      %v463 = vpop.f32.mrb[0].mxu0
      %v464 = vadd.f32 %v213, %v463
      %v465 = vpop.f32.mrb[0].mxu0
      %466 = vmatprep.mubr.f32.mxu0 0.0
      %467 = vmatmul.mubr.f32.gmra.mrb[0].mxu0 %v271
      %v468 = vpop.f32.mrb[0].mxu0
      %v469 = vadd.f32 %v213, %v468
      %v470 = vpop.f32.mrb[0].mxu0
      %471 = vmatprep.mubr.f32.mxu0 0.0
      %472 = vmatmul.mubr.f32.gmra.mrb[0].mxu0 %v274
      %v473 = vpop.f32.mrb[0].mxu0
      %v474 = vadd.f32 %v213, %v473
      %v475 = vpop.f32.mrb[0].mxu0
      %476 = vmatprep.mubr.f32.mxu0 0.0
      %477 = vmatmul.mubr.f32.gmra.mrb[0].mxu0 %v277
      %v478 = vpop.f32.mrb[0].mxu0
      %v479 = vadd.f32 %v213, %v478
      %v480 = vpop.f32.mrb[0].mxu0
      %481 = vmatprep.mubr.f32.mxu0 0.0
      %482 = vmatmul.mubr.f32.gmra.mrb[0].mxu0 %v280
      %v483 = vpop.f32.mrb[0].mxu0
      %v484 = vadd.f32 %v213, %v483
      %v485 = vpop.f32.mrb[0].mxu0
      %486 = vmatprep.mubr.f32.mxu0 0.0
      %487 = vmatmul.mubr.f32.gmra.mrb[0].mxu0 %v283
      %v488 = vpop.f32.mrb[0].mxu0
      %v489 = vadd.f32 %v213, %v488
      %v490 = vpop.f32.mrb[0].mxu0
      %491 = vmatprep.mubr.f32.mxu0 0.0
      %492 = vmatmul.mubr.f32.gmra.mrb[0].mxu0 %v286
      %v493 = vpop.f32.mrb[0].mxu0
      %v494 = vadd.f32 %v213, %v493
      %v495 = vpop.f32.mrb[0].mxu0
      %496 = vmatprep.mubr.f32.mxu0 0.0
      %497 = vmatmul.mubr.f32.gmra.mrb[0].mxu0 %v289
      %v498 = vpop.f32.mrb[0].mxu0
      %v499 = vadd.f32 %v213, %v498
      %v500 = vpop.f32.mrb[0].mxu0
      %501 = vmatprep.mubr.f32.mxu0 0.0
      %502 = vmatmul.mubr.f32.gmra.mrb[0].mxu0 %v292
      %v503 = vpop.f32.mrb[0].mxu0
      %v504 = vadd.f32 %v213, %v503
      %v505 = vpop.f32.mrb[0].mxu0
      %506 = vmatprep.mubr.f32.mxu0 0.0
      %507 = vmatmul.mubr.f32.gmra.mrb[0].mxu0 %v295
      %v508 = vpop.f32.mrb[0].mxu0
      %v509 = vadd.f32 %v213, %v508
      %v510 = vpop.f32.mrb[0].mxu0
      %511 = vmatprep.mubr.f32.mxu0 0.0
      %512 = vmatmul.mubr.f32.gmra.mrb[0].mxu0 %v298
      %v513 = vpop.f32.mrb[0].mxu0
      %v514 = vadd.f32 %v213, %v513
      %v515 = vpop.f32.mrb[0].mxu0
      %516 = vmatprep.mubr.f32.mxu0 0.0
      %517 = vmatmul.mubr.f32.gmra.mrb[0].mxu0 %v301
      %v518 = vpop.f32.mrb[0].mxu0
      %v519 = vadd.f32 %v213, %v518
      %v520 = vpop.f32.mrb[0].mxu0
      %521 = vmatprep.mubr.f32.mxu0 0.0
      %522 = vmatmul.mubr.f32.gmra.mrb[0].mxu0 %v304
      %v523 = vpop.f32.mrb[0].mxu0
      %v524 = vadd.f32 %v213, %v523
      %v525 = vpop.f32.mrb[0].mxu0
      %526 = vmatprep.mubr.f32.mxu0 0.0
      %527 = vmatmul.mubr.f32.gmra.mrb[0].mxu0 %v307
      %v528 = vpop.f32.mrb[0].mxu0
      %v529 = vadd.f32 %v213, %v528
      %v530 = vpop.f32.mrb[0].mxu0
      %531 = vmatprep.mubr.f32.mxu0 0.0
      %532 = vmatmul.mubr.f32.gmra.mrb[0].mxu0 %v310
      %v533 = vpop.f32.mrb[0].mxu0
      %v534 = vadd.f32 %v213, %v533
      %v535 = vpop.f32.mrb[0].mxu0
      %536 = vdwg.mxu0
      %537 = vst [vmem:[%s172] sm:$0xff] %v379
      %538 = vst [vmem:[%s172 + $0x8] sm:$0xff] %v384
      %539 = vst [vmem:[%s172 + $0x10] sm:$0xff] %v389
      %540 = vst [vmem:[%s172 + $0x18] sm:$0xff] %v394
      %541 = vst [vmem:[%s172 + $0x20] sm:$0xff] %v399
      %542 = vst [vmem:[%s172 + $0x28] sm:$0xff] %v404
      %543 = vst [vmem:[%s172 + $0x30] sm:$0xff] %v409
      %544 = vst [vmem:[%s172 + $0x38] sm:$0xff] %v414
      %545 = vst [vmem:[%s172 + $0x40] sm:$0xff] %v419
      %546 = vst [vmem:[%s172 + $0x48] sm:$0xff] %v424
      %547 = vst [vmem:[%s172 + $0x50] sm:$0xff] %v429
      %548 = vst [vmem:[%s172 + $0x58] sm:$0xff] %v434
      %549 = vst [vmem:[%s172 + $0x60] sm:$0xff] %v439
      %550 = vst [vmem:[%s172 + $0x68] sm:$0xff] %v444
      %551 = vst [vmem:[%s172 + $0x70] sm:$0xff] %v449
      %552 = vst [vmem:[%s172 + $0x78] sm:$0xff] %v454
      %553 = vst [vmem:[%s172 + $0x80] sm:$0xff] %v459
      %554 = vst [vmem:[%s172 + $0x88] sm:$0xff] %v464
      %555 = vst [vmem:[%s172 + $0x90] sm:$0xff] %v469
      %556 = vst [vmem:[%s172 + $0x98] sm:$0xff] %v474
      %557 = vst [vmem:[%s172 + $0xa0] sm:$0xff] %v479
      %558 = vst [vmem:[%s172 + $0xa8] sm:$0xff] %v484
      %559 = vst [vmem:[%s172 + $0xb0] sm:$0xff] %v489
      %560 = vst [vmem:[%s172 + $0xb8] sm:$0xff] %v494
      %561 = vst [vmem:[%s172 + $0xc0] sm:$0xff] %v499
      %562 = vst [vmem:[%s172 + $0xc8] sm:$0xff] %v504
      %563 = vst [vmem:[%s172 + $0xd0] sm:$0xff] %v509
      %564 = vst [vmem:[%s172 + $0xd8] sm:$0xff] %v514
      %565 = vst [vmem:[%s172 + $0xe0] sm:$0xff] %v519
      %566 = vst [vmem:[%s172 + $0xe8] sm:$0xff] %v524
      %567 = vst [vmem:[%s172 + $0xf0] sm:$0xff] %v529
      %568 = vst [vmem:[%s172 + $0xf8] sm:$0xff] %v534
      %s569 = smul.u32 32, %s14
      %p570 = scmp.lt.s32.totalorder %s569, 63
      %s571 = scalar_select %p570, %s569, 63
      %s572 = smul.addr %s571, 8
      %s573 = scalar_lea.vmem %s3, %s572
      // Predicated region
      $region33: #{upconv_pallas.1} parent=31 // pred_check
        %p574 = pneg %p100
      $region34: #{upconv_pallas.1} parent=31 // pred_check_branch
        %576 = sbr.rel (%p574) target = $region36
      $region35: #{upconv_pallas.1} parent=31 // pred_region
        %s577 = smul.u32 32, %s14
      $region36: #{upconv_pallas.1} parent=31 // pred_fallthru
        _
    $region32: #{upconv_pallas.1} parent=5 // pred_fallthru
      _
    %p578 = scmp.le.s32.totalorder 2, %s9
    // Predicated region
    $region37: #{upconv_pallas.1} parent=5 // pred_check
      %p579 = pneg %p578
    $region38: #{upconv_pallas.1} parent=5 // pred_check_branch
      %581 = sbr.rel (%p579) target = $region40
    $region39: #{upconv_pallas.1} parent=5 // pred_region
      %s582 = ssub.s32 %s9, 2
      // Predicated region
      $region41: #{upconv_pallas.1} parent=39 // pred_check
        %p583 = pneg %p106
      $region42: #{upconv_pallas.1} parent=39 // pred_check_branch
        %585 = sbr.rel (%p583) target = $region44
      $region43: #{upconv_pallas.1} parent=39 // pred_region
        %s586 = smul.u32 32, %s15
        %p587 = scmp.lt.s32.totalorder %s586, 63
        %s588 = scalar_select %p587, %s586, 63
        %s589 = smul.addr %s588, 8
        %s590 = scalar_lea.vmem %s3, %s589
      $region44: #{upconv_pallas.1} parent=39 // pred_fallthru
        _
    $region40: #{upconv_pallas.1} parent=5 // pred_fallthru
      _
  $region6: #{upconv_pallas.1} parent=0 // loop_footer
    %s13 = sadd.s32 1, %s9
  $region7: #{upconv_pallas.1} parent=0 // loop_footer_branch
    %8 = sbr.rel target = $region3
  $region8: #{upconv_pallas.1} parent=0 // loop_exit
    _

</llo_original>
